<compile_context>
chip_gen: v5e
topology: v5e:2x2
jax: 0.10.0
libtpu: 0.0.40
codegen_flags: <defaults>
</compile_context>

<pallas_src>
import functools
import math

import jax
import jax.numpy as jnp
from jax.experimental import pallas as pl
from jax.experimental.pallas import tpu as pltpu


def _round_up(x, m):
    return ((x + m - 1) // m) * m


def calc_same_padding(kernel_size):
    pad = kernel_size // 2
    return (pad, pad - (kernel_size + 1) % 2)


def _dwconv1d_kernel(*refs, K, pad_l, L, TL, H, l_axis, fuse_glu, mask_center):
    """One (batch, channel-tile, length-tile) grid step.

    refs (in order):
      x_center (1, TL, TC), x_left (1, H, TC), x_right (1, H, TC)
      [g_center, g_left, g_right]   (same shapes; GLU gate half, if fused)
      w (K, TC), b (1, TC), out (1, TL, TC)
    """
    if fuse_glu:
        xc, xl, xr, gc, gl, gr, w_ref, b_ref, o_ref = refs
    else:
        xc, xl, xr, w_ref, b_ref, o_ref = refs
        gc = gl = gr = None

    l = pl.program_id(l_axis)
    TC = o_ref.shape[2]
    base = l * TL - H                # unpadded input row held by window row 0

    # ---- assemble the (TL + 2H, TC) halo window in f32 ----------------------
    # NaN-safe select masking (NOT a 0-multiply): clamped / partial edge blocks
    # may hold NaN/Inf garbage and 0*NaN would poison valid output rows.
    segs = []
    for oref, gref, start, rows, kind in (
            (xl, gl, 0, H, "lo"),
            (xc, gc, H, TL, "mid"),
            (xr, gr, H + TL, H, "hi")):
        v = oref[0].astype(jnp.float32)
        if fuse_glu:
            v = v * jax.nn.sigmoid(gref[0].astype(jnp.float32))
        if kind == "lo":
            # only the lower bound can fail here (conv left-padding rows)
            row = jax.lax.broadcasted_iota(jnp.int32, (rows, 1), 0) + (base + start)
            v = jnp.where(row >= 0, v, 0.0)
        elif kind == "hi" or mask_center:
            # rows at / past the end of the sequence
            row = jax.lax.broadcasted_iota(jnp.int32, (rows, 1), 0) + (base + start)
            v = jnp.where(row < L, v, 0.0)
        segs.append(v)
    buf = jnp.concatenate(segs, axis=0)                          # (TL+2H, TC)

    # ---- shift-and-MAC over the K taps, grouped by sublane phase ------------
    # One rotated window per phase (<= 8 total) instead of K (=31) sublane-
    # misaligned slices; the per-tap slices below are all 8-row aligned.
    off = H - pad_l                  # window row of padded-stream position l*TL
    groups = {}
    for k in range(K):
        groups.setdefault((off + k) % 8, []).append(k)

    acc = jnp.broadcast_to(b_ref[...].astype(jnp.float32), (TL, TC))
    for r in sorted(groups):
        # Rotate rows up by r; the wrapped tail rows are never addressed below
        # (off + k + TL <= TL + 2H always).
        # TODO(synk): swap for pltpu.roll (XLU slot) once confirmed on the
        # target jax version; this jnp form is the interpret-safe equivalent.
        shifted = buf if r == 0 else jnp.concatenate([buf[r:], buf[:r]], axis=0)
        for k in groups[r]:
            a = off + k - r                                   # multiple of 8
            wk = w_ref[pl.ds(k, 1), :].astype(jnp.float32)    # (1, TC) tap
            acc = acc + shifted[a:a + TL, :] * wk

    o_ref[...] = acc[None, :, :].astype(o_ref.dtype)


def _depthwise_conv1d_call(x, weight, bias, padding, *, fuse_glu, length_tile):
    B, L, Cin = x.shape
    C, _, K = weight.shape
    pad_l, pad_r = padding
    if fuse_glu:
        assert Cin == 2 * C, "fused GLU expects channel-last input of width 2*chan"
        assert C % 128 == 0 or C == Cin // 2 and C % 128 == 0 or C % 128 == 0, ""
        assert C % 128 == 0, "fused GLU path expects inner_dim % 128 == 0"
    else:
        assert Cin == C
    assert pad_l >= 0 and pad_r >= 0 and pad_l + pad_r <= K - 1, \
        "only 'same' / causal style padding (pad_l + pad_r <= K-1) is supported"
    L_out = L + pad_l + pad_r - K + 1
    assert L_out >= 1

    # Sublane granule of the I/O dtype (f32: 8 rows, bf16: 16, int8: 32).
    granule = max(8, 32 // jnp.dtype(x.dtype).itemsize)
    H = _round_up(max(K - 1, 1), granule)        # halo rows per side
    assert pad_l <= H and (K - 1 - pad_l) <= H

    TL = _round_up(min(length_tile, L_out), H)   # length tile (multiple of H)
    TC = C if C <= 128 else 128                  # lane-dense channel tile
    nL = pl.cdiv(L_out, TL)
    nC = pl.cdiv(C, TC)
    nH = pl.cdiv(L, H)                           # halo-sized blocks over L
    SH = TL // H                                 # halo blocks per length tile
    mask_center = (nL * TL > L)                  # can a centre block be partial?
    goff = (C // TC) if fuse_glu else 0          # channel-block offset of gate half

    w_kc = jnp.transpose(weight[:, 0, :], (1, 0))      # (K, C): tap k, channel c
    b_1c = bias.reshape(1, C)

    # Grid: all-parallel; put the largest extent first so the v7x 2-TC
    # megacore split lands on it (no-op on single-TC v5e/v6e).
    extents = {"b": B, "c": nC, "l": nL}
    order = sorted(("b", "c", "l"), key=lambda n: -extents[n])
    pos = {n: i for i, n in enumerate(order)}
    grid = tuple(extents[n] for n in order)

    def _bcl(fn):
        def index_map(*g):
            return fn(g[pos["b"]], g[pos["c"]], g[pos["l"]])
        return index_map

    def center_spec(co):
        return pl.BlockSpec((1, TL, TC), _bcl(lambda b, c, l: (b, l, c + co)))

    def left_spec(co):
        # last H rows before this tile; clamped fetch at l == 0 is masked in-kernel
        return pl.BlockSpec(
            (1, H, TC),
            _bcl(lambda b, c, l: (b, jnp.maximum(l * SH - 1, 0), c + co)))

    def right_spec(co):
        # first H rows after this tile; clamped fetch at the end is masked in-kernel
        return pl.BlockSpec(
            (1, H, TC),
            _bcl(lambda b, c, l: (b, jnp.minimum((l + 1) * SH, nH - 1), c + co)))

    in_specs = [center_spec(0), left_spec(0), right_spec(0)]
    operands = [x, x, x]
    if fuse_glu:
        in_specs += [center_spec(goff), left_spec(goff), right_spec(goff)]
        operands += [x, x, x]
    in_specs += [pl.BlockSpec((K, TC), _bcl(lambda b, c, l: (0, c))),
                 pl.BlockSpec((1, TC), _bcl(lambda b, c, l: (0, c)))]
    operands += [w_kc, b_1c]

    kernel = functools.partial(
        _dwconv1d_kernel, K=K, pad_l=pad_l, L=L, TL=TL, H=H,
        l_axis=pos["l"], fuse_glu=fuse_glu, mask_center=mask_center)

    # Advisory cost.  NB: on v6e/v7x this kernel is VALU-bound at K~31 (no f32
    # FMA), not memory-bound; the estimate just lets XLA schedule neighbouring
    # encoder GEMMs around the call.
    itemsize = jnp.dtype(x.dtype).itemsize
    in_copies = 2 if fuse_glu else 1
    cost = pl.CostEstimate(
        flops=2 * B * L_out * C * K + (4 * B * nL * TL * C if fuse_glu else 0),
        transcendentals=(B * nL * (TL + 2 * H) * C) if fuse_glu else 0,
        bytes_accessed=(in_copies * B * nL * (TL + 2 * H) * nC * TC * itemsize
                        + B * L_out * C * itemsize
                        + K * C * 4 + C * 4))

    grid_spec = pltpu.PrefetchScalarGridSpec(
        num_scalar_prefetch=0,
        grid=grid,
        in_specs=in_specs,
        out_specs=pl.BlockSpec((1, TL, TC), _bcl(lambda b, c, l: (b, l, c))),
    )

    return pl.pallas_call(
        kernel,
        out_shape=jax.ShapeDtypeStruct((B, L_out, C), x.dtype),
        grid_spec=grid_spec,
        compiler_params=pltpu.CompilerParams(
            dimension_semantics=("parallel", "parallel", "parallel"),
            vmem_limit_bytes=48 * 1024 * 1024),
        cost_estimate=cost,
    )(*operands)


def depthwise_conv1d_nlc(x_blc, weight, bias, padding, *, length_tile=1024):
    """DepthWiseConv1d.forward on channel-last (B, L, C) activations."""
    return _depthwise_conv1d_call(x_blc, weight, bias, padding,
                                  fuse_glu=False, length_tile=length_tile)


def glu_depthwise_conv1d_nlc(x_bl2c, weight, bias, padding, *, length_tile=1024):
    """GLU (channel-halves) fused with DepthWiseConv1d.forward.

    x_bl2c: (B, L, 2*C) channel-last output of the preceding pointwise conv;
    the depthwise conv runs on x[..., :C] * sigmoid(x[..., C:]).
    """
    return _depthwise_conv1d_call(x_bl2c, weight, bias, padding,
                                  fuse_glu=True, length_tile=length_tile)


# ----------------------------- pure-JAX references -----------------------------

def _reference_dwconv_nlc(x_blc, weight, bias, padding):
    """F.pad + nn.Conv1d(groups=chan_in) on channel-last data."""
    pad_l, pad_r = padding
    K = weight.shape[-1]
    xf = x_blc.astype(jnp.float32)
    x_pad = jnp.pad(xf, ((0, 0), (pad_l, pad_r), (0, 0)))
    L_out = x_pad.shape[1] - K + 1
    w = jnp.transpose(weight[:, 0, :], (1, 0)).astype(jnp.float32)   # (K, C)
    acc = jnp.broadcast_to(bias.astype(jnp.float32)[None, None, :],
                           (x_blc.shape[0], L_out, x_blc.shape[2]))
    for k in range(K):
        acc = acc + x_pad[:, k:k + L_out, :] * w[k][None, None, :]
    return acc


def _reference_glu_dwconv_nlc(x_bl2c, weight, bias, padding):
    C = weight.shape[0]
    xf = x_bl2c.astype(jnp.float32)
    glu = xf[..., :C] * jax.nn.sigmoid(xf[..., C:])
    return _reference_dwconv_nlc(glu, weight, bias, padding)


if __name__ == "__main__":
    root_key = jax.random.PRNGKey(0)

    def make_inputs(key, B, Cin, L, C, K, dtype):
        kx, kw, kb = jax.random.split(key, 3)
        bound = 1.0 / math.sqrt(K)   # nn.Conv1d default init (groups=C -> fan_in=K)
        x = jax.random.normal(kx, (B, L, Cin), jnp.float32).astype(dtype)
        w = jax.random.uniform(kw, (C, 1, K), jnp.float32, -bound, bound)
        b = jax.random.uniform(kb, (C,), jnp.float32, -bound, bound)
        return x, w, b

    # (fuse_glu, B, C, L, K, padding, dtype, tol, length_tile)
    cases = [
        (False, 2, 8,   16,  3, calc_same_padding(3),  jnp.float32,  1e-5, 1024),
        # module default conv: kernel_size=31, "same" padding (15, 15)
        (False, 2, 16,  40, 31, calc_same_padding(31), jnp.float32,  1e-5, 1024),
        # causal padding + bf16 I/O (f32 accumulation in-kernel)
        (False, 1, 8,   32,  5, (4, 0),                jnp.bfloat16, 5e-2, 1024),
        # C > 128: lane-dense 128-channel tiles
        (False, 1, 256, 24,  3, calc_same_padding(3),  jnp.float32,  1e-5, 1024),
        # multiple length tiles + cross-tile halos + partial last tile
        (False, 1, 8,  200, 31, calc_same_padding(31), jnp.float32,  1e-5, 64),
        # fused GLU -> depthwise conv (the adjacent ConformerConvModule op)
        (True,  2, 128, 40, 31, calc_same_padding(31), jnp.float32,  1e-5, 1024),
        (True,  1, 256, 24,  3, calc_same_padding(3),  jnp.float32,  1e-5, 1024),
    ]

    keys = jax.random.split(root_key, len(cases))
    for case_key, (fuse, B, C, L, K, padding, dtype, tol, ltile) in zip(keys, cases):
        Cin = 2 * C if fuse else C
        x, w, b = make_inputs(case_key, B, Cin, L, C, K, dtype)
        if fuse:
            out = glu_depthwise_conv1d_nlc(x, w, b, padding, length_tile=ltile)
            ref = _reference_glu_dwconv_nlc(x, w, b, padding)
        else:
            out = depthwise_conv1d_nlc(x, w, b, padding, length_tile=ltile)
            ref = _reference_dwconv_nlc(x, w, b, padding)
        out = jax.block_until_ready(out)
        assert out.shape == ref.shape and out.dtype == dtype, (out.shape, out.dtype)
        assert jnp.allclose(out.astype(jnp.float32), ref, atol=tol, rtol=tol), (
            f"mismatch: fuse_glu={fuse} B={B} C={C} L={L} K={K} "
            f"pad={padding} dtype={dtype}")

    print("KERNEL_OK")
</pallas_src>

<mosaic_0001>
module attributes {stable_mosaic.version = 11 : i64} {
  func.func @_dwconv1d_kernel(%arg0: i32, %arg1: i32, %arg2: i32, %arg3: memref<1x16x8xf32, #tpu.memory_space<vmem>>, %arg4: memref<1x8x8xf32, #tpu.memory_space<vmem>>, %arg5: memref<1x8x8xf32, #tpu.memory_space<vmem>>, %arg6: memref<3x8xf32, #tpu.memory_space<vmem>>, %arg7: memref<1x8xf32, #tpu.memory_space<vmem>>, %arg8: memref<1x16x8xf32, #tpu.memory_space<vmem>>) attributes {dimension_semantics = [#tpu.dimension_semantics<parallel>, #tpu.dimension_semantics<parallel>, #tpu.dimension_semantics<parallel>], iteration_bounds = array<i64: 2, 1, 1>, scalar_prefetch = 0 : i64, scratch_operands = 0 : i64, tpu.core_type = #tpu.core_type<tc>, window_params = [{transform_indices = @transform_0, window_bounds = array<i64: 1, 16, 8>}, {transform_indices = @transform_1, window_bounds = array<i64: 1, 8, 8>}, {transform_indices = @transform_2, window_bounds = array<i64: 1, 8, 8>}, {transform_indices = @transform_3, window_bounds = array<i64: 3, 8>}, {transform_indices = @transform_4, window_bounds = array<i64: 1, 8>}, {transform_indices = @transform_5, window_bounds = array<i64: 1, 16, 8>}]} {
    %c16_i32 = arith.constant 16 : i32
    %0 = arith.muli %arg2, %c16_i32 : i32
    %c8_i32 = arith.constant 8 : i32
    %1 = arith.subi %0, %c8_i32 : i32
    %c0 = arith.constant 0 : index
    %c0_0 = arith.constant 0 : index
    %c0_1 = arith.constant 0 : index
    %2 = vector.load %arg4[%c0, %c0_0, %c0_1] : memref<1x8x8xf32, #tpu.memory_space<vmem>>, vector<1x8x8xf32>
    %3 = vector.shape_cast %2 : vector<1x8x8xf32> to vector<8x8xf32>
    %4 = tpu.iota {dimensions = array<i32: 0>} : vector<8x1xi32>
    %c0_i32 = arith.constant 0 : i32
    %5 = arith.addi %1, %c0_i32 : i32
    %6 = vector.broadcast %5 : i32 to vector<8x1xi32>
    %7 = arith.addi %4, %6 : vector<8x1xi32>
    %c0_i32_2 = arith.constant 0 : i32
    %8 = vector.broadcast %c0_i32_2 : i32 to vector<8x1xi32>
    %9 = arith.cmpi sge, %7, %8 : vector<8x1xi32>
    %cst = arith.constant 0.000000e+00 : f32
    %10 = vector.shape_cast %9 : vector<8x1xi1> to vector<8x1xi1>
    %11 = vector.broadcast %10 : vector<8x1xi1> to vector<8x8xi1>
    %12 = vector.broadcast %cst : f32 to vector<8x8xf32>
    %13 = arith.select %11, %3, %12 : vector<8x8xi1>, vector<8x8xf32>
    %c0_3 = arith.constant 0 : index
    %c0_4 = arith.constant 0 : index
    %c0_5 = arith.constant 0 : index
    %14 = vector.load %arg3[%c0_3, %c0_4, %c0_5] : memref<1x16x8xf32, #tpu.memory_space<vmem>>, vector<1x16x8xf32>
    %15 = vector.shape_cast %14 : vector<1x16x8xf32> to vector<16x8xf32>
    %c0_6 = arith.constant 0 : index
    %c0_7 = arith.constant 0 : index
    %c0_8 = arith.constant 0 : index
    %16 = vector.load %arg5[%c0_6, %c0_7, %c0_8] : memref<1x8x8xf32, #tpu.memory_space<vmem>>, vector<1x8x8xf32>
    %17 = vector.shape_cast %16 : vector<1x8x8xf32> to vector<8x8xf32>
    %18 = tpu.iota {dimensions = array<i32: 0>} : vector<8x1xi32>
    %c24_i32 = arith.constant 24 : i32
    %19 = arith.addi %1, %c24_i32 : i32
    %20 = vector.broadcast %19 : i32 to vector<8x1xi32>
    %21 = arith.addi %18, %20 : vector<8x1xi32>
    %c16_i32_9 = arith.constant 16 : i32
    %22 = vector.broadcast %c16_i32_9 : i32 to vector<8x1xi32>
    %23 = arith.cmpi slt, %21, %22 : vector<8x1xi32>
    %cst_10 = arith.constant 0.000000e+00 : f32
    %24 = vector.shape_cast %23 : vector<8x1xi1> to vector<8x1xi1>
    %25 = vector.broadcast %24 : vector<8x1xi1> to vector<8x8xi1>
    %26 = vector.broadcast %cst_10 : f32 to vector<8x8xf32>
    %27 = arith.select %25, %17, %26 : vector<8x8xi1>, vector<8x8xf32>
    %28 = tpu.concatenate %13, %15, %27 in 0 : vector<8x8xf32>, vector<16x8xf32>, vector<8x8xf32> -> vector<32x8xf32>
    %c0_11 = arith.constant 0 : index
    %c0_12 = arith.constant 0 : index
    %29 = vector.load %arg7[%c0_11, %c0_12] : memref<1x8xf32, #tpu.memory_space<vmem>>, vector<1x8xf32>
    %30 = vector.shape_cast %29 : vector<1x8xf32> to vector<1x8xf32>
    %31 = vector.broadcast %30 : vector<1x8xf32> to vector<16x8xf32>
    %c1 = arith.constant 1 : index
    %c0_13 = arith.constant 0 : index
    %32 = vector.load %arg6[%c1, %c0_13] : memref<3x8xf32, #tpu.memory_space<vmem>>, vector<1x8xf32>
    %33 = vector.extract_strided_slice %28 {offsets = [8, 0], sizes = [16, 8], strides = [1, 1]} : vector<32x8xf32> to vector<16x8xf32>
    %34 = vector.broadcast %32 : vector<1x8xf32> to vector<16x8xf32>
    %35 = arith.mulf %33, %34 : vector<16x8xf32>
    %36 = arith.addf %31, %35 : vector<16x8xf32>
    %37 = vector.extract_strided_slice %28 {offsets = [1, 0], sizes = [31, 8], strides = [1, 1]} : vector<32x8xf32> to vector<31x8xf32>
    %38 = vector.extract_strided_slice %28 {offsets = [0, 0], sizes = [1, 8], strides = [1, 1]} : vector<32x8xf32> to vector<1x8xf32>
    %39 = tpu.concatenate %37, %38 in 0 : vector<31x8xf32>, vector<1x8xf32> -> vector<32x8xf32>
    %c2 = arith.constant 2 : index
    %c0_14 = arith.constant 0 : index
    %40 = vector.load %arg6[%c2, %c0_14] : memref<3x8xf32, #tpu.memory_space<vmem>>, vector<1x8xf32>
    %41 = vector.extract_strided_slice %39 {offsets = [8, 0], sizes = [16, 8], strides = [1, 1]} : vector<32x8xf32> to vector<16x8xf32>
    %42 = vector.broadcast %40 : vector<1x8xf32> to vector<16x8xf32>
    %43 = arith.mulf %41, %42 : vector<16x8xf32>
    %44 = arith.addf %36, %43 : vector<16x8xf32>
    %45 = vector.extract_strided_slice %28 {offsets = [7, 0], sizes = [25, 8], strides = [1, 1]} : vector<32x8xf32> to vector<25x8xf32>
    %46 = vector.extract_strided_slice %28 {offsets = [0, 0], sizes = [7, 8], strides = [1, 1]} : vector<32x8xf32> to vector<7x8xf32>
    %47 = tpu.concatenate %45, %46 in 0 : vector<25x8xf32>, vector<7x8xf32> -> vector<32x8xf32>
    %c0_15 = arith.constant 0 : index
    %c0_16 = arith.constant 0 : index
    %48 = vector.load %arg6[%c0_15, %c0_16] : memref<3x8xf32, #tpu.memory_space<vmem>>, vector<1x8xf32>
    %49 = vector.extract_strided_slice %47 {offsets = [0, 0], sizes = [16, 8], strides = [1, 1]} : vector<32x8xf32> to vector<16x8xf32>
    %50 = vector.broadcast %48 : vector<1x8xf32> to vector<16x8xf32>
    %51 = arith.mulf %49, %50 : vector<16x8xf32>
    %52 = arith.addf %44, %51 : vector<16x8xf32>
    %53 = vector.shape_cast %52 : vector<16x8xf32> to vector<1x16x8xf32>
    %c0_17 = arith.constant 0 : index
    %c0_18 = arith.constant 0 : index
    %c0_19 = arith.constant 0 : index
    %54 = vector.load %arg8[%c0_17, %c0_18, %c0_19] : memref<1x16x8xf32, #tpu.memory_space<vmem>>, vector<1x16x8xf32>
    tpu.vector_store %arg8[%c0_17, %c0_18, %c0_19], %53 {strides = array<i32>} : memref<1x16x8xf32, #tpu.memory_space<vmem>>, vector<1x16x8xf32>,
    return
  }
  func.func @transform_0(%arg0: i32, %arg1: i32, %arg2: i32) -> (i32, i32, i32) {
    %c0_i32 = arith.constant 0 : i32
    %0 = arith.addi %arg1, %c0_i32 : i32
    %c0_i32_0 = arith.constant 0 : i32
    return %arg0, %arg2, %0 : i32, i32, i32
  }
  func.func @transform_1(%arg0: i32, %arg1: i32, %arg2: i32) -> (i32, i32, i32) {
    %c2_i32 = arith.constant 2 : i32
    %0 = arith.muli %arg2, %c2_i32 : i32
    %c1_i32 = arith.constant 1 : i32
    %1 = arith.subi %0, %c1_i32 : i32
    %c0_i32 = arith.constant 0 : i32
    %2 = arith.maxsi %1, %c0_i32 : i32
    %c0_i32_0 = arith.constant 0 : i32
    %3 = arith.addi %arg1, %c0_i32_0 : i32
    %c0_i32_1 = arith.constant 0 : i32
    return %arg0, %2, %3 : i32, i32, i32
  }
  func.func @transform_2(%arg0: i32, %arg1: i32, %arg2: i32) -> (i32, i32, i32) {
    %c1_i32 = arith.constant 1 : i32
    %0 = arith.addi %arg2, %c1_i32 : i32
    %c2_i32 = arith.constant 2 : i32
    %1 = arith.muli %0, %c2_i32 : i32
    %c1_i32_0 = arith.constant 1 : i32
    %2 = arith.minsi %1, %c1_i32_0 : i32
    %c0_i32 = arith.constant 0 : i32
    %3 = arith.addi %arg1, %c0_i32 : i32
    %c0_i32_1 = arith.constant 0 : i32
    return %arg0, %2, %3 : i32, i32, i32
  }
  func.func @transform_3(%arg0: i32, %arg1: i32, %arg2: i32) -> (i32, i32) {
    %c0_i32 = arith.constant 0 : i32
    %c0_i32_0 = arith.constant 0 : i32
    return %c0_i32, %arg1 : i32, i32
  }
  func.func @transform_4(%arg0: i32, %arg1: i32, %arg2: i32) -> (i32, i32) {
    %c0_i32 = arith.constant 0 : i32
    %c0_i32_0 = arith.constant 0 : i32
    return %c0_i32, %arg1 : i32, i32
  }
  func.func @transform_5(%arg0: i32, %arg1: i32, %arg2: i32) -> (i32, i32, i32) {
    %c0_i32 = arith.constant 0 : i32
    return %arg0, %arg2, %arg1 : i32, i32, i32
  }
}

</mosaic_0001>

<llo_original>
// kernel: tpu_custom_call.1
$region0: #{tpu_custom_call.1}
  #allocation0 [shape = 'u32[]', space=smem, size = 0x4, offset = 0x4, fixed_abs, tag = 'smem constant byte address 0x4 - core index']
  #allocation1 [shape = 'u32[72,128]{1,0:T(1,128)}', space=vmem, size = 0x9000, scoped, tag = 'internal scratch']
  %s0 = inlined_call_operand.vmem [shape: f32[2,16,8], index: 0, kind: input, shape index: {}]
  %s1 = inlined_call_operand.vmem [shape: f32[2,16,8], index: 1, kind: input, shape index: {}]
  %s2 = inlined_call_operand.vmem [shape: f32[2,16,8], index: 2, kind: input, shape index: {}]
  %s3 = inlined_call_operand.vmem [shape: f32[3,8], index: 3, kind: input, shape index: {}]
  %s4 = inlined_call_operand.vmem [shape: f32[1,8], index: 4, kind: input, shape index: {}]
  %s5 = inlined_call_operand.vmem [shape: f32[2,16,8], index: 5, kind: output, shape index: {}]
  %s6 = sld [smem:[#allocation0]]
  $region53: #{tpu_custom_call.1} parent=0
    _
  %s8 = ssub.s32 1, %s6
  %s9 = scalar_select 0, %s8, %s6
  loop: start=0, step=1, limit=4
  $region2: #{tpu_custom_call.1} parent=0 // loop_pre_header
    _
  $region3: #{tpu_custom_call.1} parent=0 // loop_header
    %s11 = sphi 0, %s15
    %p12 = scmp.ge.s32.totalorder %s11, 4
    %s18 = sphi 0, %s37
    %s19 = sphi 0, %s33
    %s20 = sphi 0, %s29
    %s21 = sphi 0, %s18
    %s22 = sphi 0, %s19
    %s23 = sphi 0, %s20
    %s24 = sphi 0, %s21
    %s25 = sphi 0, %s22
    %s26 = sphi 0, %s23
    %s44 = sphi 0, %s46
    %s47 = sphi 0, %s44
    %s48 = sphi 0, %s47
    %s64 = sphi 0, %s48
    %s82 = sphi 0, %s84
    %s85 = sphi 0, %s82
    %s86 = sphi 0, %s85
    %s102 = sphi 0, %s86
    %s120 = sphi 0, %s122
    %s123 = sphi 0, %s120
    %s124 = sphi 0, %s123
    %s140 = sphi 0, %s124
    %s146 = sphi 0, %s148
    %s149 = sphi 0, %s146
    %s150 = sphi 0, %s149
    %s166 = sphi 0, %s150
    %s172 = sphi 0, %s174
    %s175 = sphi 0, %s172
    %s176 = sphi 0, %s175
    %s192 = sphi 0, %s176
    %s202 = sphi 0, %s204
    %s205 = sphi 0, %s202
    %s206 = sphi 0, %s205
    %s222 = sphi 0, %s206
  $region4: #{tpu_custom_call.1} parent=0 // loop_header_branch
    %14 = sbr.rel (%p12) target = $region8
  $region5: #{tpu_custom_call.1} parent=0 // loop_body
    %s16 = ssub.s32 %s11, 1
    %s17 = ssub.s32 %s11, 2
    %s27 = sadd.s32 1, %s20
    %p28 = scmp.ge.s32.totalorder %s27, 1
    %s29 = scalar_select %p28, 0, %s27
    %s30 = sadd.s32 1, %s19
    %s31 = scalar_select %p28, %s30, %s19
    %p32 = scmp.ge.s32.totalorder %s31, 1
    %s33 = scalar_select %p32, 0, %s31
    %s34 = sadd.s32 1, %s18
    %s35 = scalar_select %p32, %s34, %s18
    %p36 = scmp.ge.s32.totalorder %s35, 2
    %s37 = scalar_select %p36, 0, %s35
    %s38 = ssub.s32 %s18, %s37
    %s39 = ssub.s32 %s20, %s29
    %s40 = sor.u32 %s38, %s39
    %s41 = ssub.s32 %s19, %s33
    %s42 = sor.u32 %s40, %s41
    %p43 = scmp.eq.s32.totalorder %s42, 0
    %s45 = sadd.s32 %s44, 1
    %s46 = scalar_select %p43, %s44, %s45
    %p49 = pneg %p43
    %p50 = scmp.eq.s32.totalorder %s11, 1
    %p51 = por %p49, %p50
    %p52 = scmp.ne.s32.totalorder %s44, %s47
    %p53 = scmp.eq.s32.totalorder %s11, 0
    %p54 = por %p52, %p53
    %p55 = scmp.ne.s32.totalorder %s44, %s47
    %p56 = scmp.eq.s32.totalorder %s16, 1
    %p57 = por %p55, %p56
    %p58 = scmp.ne.s32.totalorder %s47, %s48
    %p59 = scmp.eq.s32.totalorder %s16, 0
    %p60 = por %p58, %p59
    %p61 = scmp.ne.s32.totalorder %s47, %s48
    %p62 = scmp.eq.s32.totalorder %s17, 1
    %p63 = por %p61, %p62
    %p65 = scmp.ne.s32.totalorder %s48, %s64
    %p66 = scmp.eq.s32.totalorder %s17, 0
    %p67 = por %p65, %p66
    %s68 = smul.u32 %s20, 2
    %s69 = ssub.s32 %s68, 1
    %p70 = scmp.gt.s32.totalorder %s69, 0
    %s71 = scalar_select %p70, %s69, 0
    %s72 = smul.u32 %s29, 2
    %s73 = ssub.s32 %s72, 1
    %p74 = scmp.gt.s32.totalorder %s73, 0
    %s75 = scalar_select %p74, %s73, 0
    %s76 = ssub.s32 %s18, %s37
    %s77 = ssub.s32 %s71, %s75
    %s78 = sor.u32 %s76, %s77
    %s79 = ssub.s32 %s19, %s33
    %s80 = sor.u32 %s78, %s79
    %p81 = scmp.eq.s32.totalorder %s80, 0
    %s83 = sadd.s32 %s82, 1
    %s84 = scalar_select %p81, %s82, %s83
    %p87 = pneg %p81
    %p88 = scmp.eq.s32.totalorder %s11, 1
    %p89 = por %p87, %p88
    %p90 = scmp.ne.s32.totalorder %s82, %s85
    %p91 = scmp.eq.s32.totalorder %s11, 0
    %p92 = por %p90, %p91
    %p93 = scmp.ne.s32.totalorder %s82, %s85
    %p94 = scmp.eq.s32.totalorder %s16, 1
    %p95 = por %p93, %p94
    %p96 = scmp.ne.s32.totalorder %s85, %s86
    %p97 = scmp.eq.s32.totalorder %s16, 0
    %p98 = por %p96, %p97
    %p99 = scmp.ne.s32.totalorder %s85, %s86
    %p100 = scmp.eq.s32.totalorder %s17, 1
    %p101 = por %p99, %p100
    %p103 = scmp.ne.s32.totalorder %s86, %s102
    %p104 = scmp.eq.s32.totalorder %s17, 0
    %p105 = por %p103, %p104
    %s106 = sadd.s32 %s20, 1
    %s107 = smul.u32 %s106, 2
    %p108 = scmp.lt.s32.totalorder %s107, 1
    %s109 = scalar_select %p108, %s107, 1
    %s110 = sadd.s32 %s29, 1
    %s111 = smul.u32 %s110, 2
    %p112 = scmp.lt.s32.totalorder %s111, 1
    %s113 = scalar_select %p112, %s111, 1
    %s114 = ssub.s32 %s18, %s37
    %s115 = ssub.s32 %s109, %s113
    %s116 = sor.u32 %s114, %s115
    %s117 = ssub.s32 %s19, %s33
    %s118 = sor.u32 %s116, %s117
    %p119 = scmp.eq.s32.totalorder %s118, 0
    %s121 = sadd.s32 %s120, 1
    %s122 = scalar_select %p119, %s120, %s121
    %p125 = pneg %p119
    %p126 = scmp.eq.s32.totalorder %s11, 1
    %p127 = por %p125, %p126
    %p128 = scmp.ne.s32.totalorder %s120, %s123
    %p129 = scmp.eq.s32.totalorder %s11, 0
    %p130 = por %p128, %p129
    %p131 = scmp.ne.s32.totalorder %s120, %s123
    %p132 = scmp.eq.s32.totalorder %s16, 1
    %p133 = por %p131, %p132
    %p134 = scmp.ne.s32.totalorder %s123, %s124
    %p135 = scmp.eq.s32.totalorder %s16, 0
    %p136 = por %p134, %p135
    %p137 = scmp.ne.s32.totalorder %s123, %s124
    %p138 = scmp.eq.s32.totalorder %s17, 1
    %p139 = por %p137, %p138
    %p141 = scmp.ne.s32.totalorder %s124, %s140
    %p142 = scmp.eq.s32.totalorder %s17, 0
    %p143 = por %p141, %p142
    %s144 = ssub.s32 %s19, %s33
    %p145 = scmp.eq.s32.totalorder %s144, 0
    %s147 = sadd.s32 %s146, 1
    %s148 = scalar_select %p145, %s146, %s147
    %p151 = pneg %p145
    %p152 = scmp.eq.s32.totalorder %s11, 1
    %p153 = por %p151, %p152
    %p154 = scmp.ne.s32.totalorder %s146, %s149
    %p155 = scmp.eq.s32.totalorder %s11, 0
    %p156 = por %p154, %p155
    %p157 = scmp.ne.s32.totalorder %s146, %s149
    %p158 = scmp.eq.s32.totalorder %s16, 1
    %p159 = por %p157, %p158
    %p160 = scmp.ne.s32.totalorder %s149, %s150
    %p161 = scmp.eq.s32.totalorder %s16, 0
    %p162 = por %p160, %p161
    %p163 = scmp.ne.s32.totalorder %s149, %s150
    %p164 = scmp.eq.s32.totalorder %s17, 1
    %p165 = por %p163, %p164
    %p167 = scmp.ne.s32.totalorder %s150, %s166
    %p168 = scmp.eq.s32.totalorder %s17, 0
    %p169 = por %p167, %p168
    %s170 = ssub.s32 %s19, %s33
    %p171 = scmp.eq.s32.totalorder %s170, 0
    %s173 = sadd.s32 %s172, 1
    %s174 = scalar_select %p171, %s172, %s173
    %p177 = pneg %p171
    %p178 = scmp.eq.s32.totalorder %s11, 1
    %p179 = por %p177, %p178
    %p180 = scmp.ne.s32.totalorder %s172, %s175
    %p181 = scmp.eq.s32.totalorder %s11, 0
    %p182 = por %p180, %p181
    %p183 = scmp.ne.s32.totalorder %s172, %s175
    %p184 = scmp.eq.s32.totalorder %s16, 1
    %p185 = por %p183, %p184
    %p186 = scmp.ne.s32.totalorder %s175, %s176
    %p187 = scmp.eq.s32.totalorder %s16, 0
    %p188 = por %p186, %p187
    %p189 = scmp.ne.s32.totalorder %s175, %s176
    %p190 = scmp.eq.s32.totalorder %s17, 1
    %p191 = por %p189, %p190
    %p193 = scmp.ne.s32.totalorder %s176, %s192
    %p194 = scmp.eq.s32.totalorder %s17, 0
    %p195 = por %p193, %p194
    %s196 = ssub.s32 %s18, %s37
    %s197 = ssub.s32 %s20, %s29
    %s198 = sor.u32 %s196, %s197
    %s199 = ssub.s32 %s19, %s33
    %s200 = sor.u32 %s198, %s199
    %p201 = scmp.eq.s32.totalorder %s200, 0
    %s203 = sadd.s32 %s202, 1
    %s204 = scalar_select %p201, %s202, %s203
    %p207 = pneg %p201
    %p208 = scmp.eq.s32.totalorder %s11, 1
    %p209 = por %p207, %p208
    %p210 = scmp.ne.s32.totalorder %s202, %s205
    %p211 = scmp.eq.s32.totalorder %s11, 0
    %p212 = por %p210, %p211
    %p213 = scmp.ne.s32.totalorder %s202, %s205
    %p214 = scmp.eq.s32.totalorder %s16, 1
    %p215 = por %p213, %p214
    %p216 = scmp.ne.s32.totalorder %s205, %s206
    %p217 = scmp.eq.s32.totalorder %s16, 0
    %p218 = por %p216, %p217
    %p219 = scmp.ne.s32.totalorder %s205, %s206
    %p220 = scmp.eq.s32.totalorder %s17, 1
    %p221 = por %p219, %p220
    %p223 = scmp.ne.s32.totalorder %s206, %s222
    %p224 = scmp.eq.s32.totalorder %s17, 0
    %p225 = por %p223, %p224
    %p226 = scmp.le.s32.totalorder 1, %s11
    %p227 = scmp.lt.s32.totalorder %s11, 3
    %p228 = pnand %p226, %p227
    %p229 = pneg %p228
    // Predicated region
    $region9: #{tpu_custom_call.1} parent=5 // pred_check
      _
    $region10: #{tpu_custom_call.1} parent=5 // pred_check_branch
      %231 = sbr.rel (%p228) target = $region12
    $region11: #{tpu_custom_call.1} parent=5 // pred_region
      %s232 = ssub.s32 %s11, 1
      // Predicated region
      $region13: #{tpu_custom_call.1} parent=11 // pred_check
        %p233 = pneg %p162
      $region14: #{tpu_custom_call.1} parent=11 // pred_check_branch
        %235 = sbr.rel (%p233) target = $region16
      $region15: #{tpu_custom_call.1} parent=11 // pred_region
        %p236 = scmp.lt.s32.totalorder %s22, 0
        %s237 = scalar_select %p236, %s22, 0
        %s238 = smul.addr %s237, 4
        %s239 = scalar_lea.vmem %s3, %s238
      $region16: #{tpu_custom_call.1} parent=11 // pred_fallthru
        _
      // Predicated region
      $region17: #{tpu_custom_call.1} parent=11 // pred_check
        %p240 = pneg %p188
      $region18: #{tpu_custom_call.1} parent=11 // pred_check_branch
        %242 = sbr.rel (%p240) target = $region20
      $region19: #{tpu_custom_call.1} parent=11 // pred_region
        %p243 = scmp.lt.s32.totalorder %s22, 0
        %s244 = scalar_select %p243, %s22, 0
        %s245 = scalar_lea.vmem %s4, %s244
      $region20: #{tpu_custom_call.1} parent=11 // pred_fallthru
        _
    $region12: #{tpu_custom_call.1} parent=5 // pred_fallthru
      _
    %p246 = scmp.lt.s32.totalorder %s11, 2
    // Predicated region
    $region21: #{tpu_custom_call.1} parent=5 // pred_check
      %p247 = pneg %p246
    $region22: #{tpu_custom_call.1} parent=5 // pred_check_branch
      %249 = sbr.rel (%p247) target = $region24
    $region23: #{tpu_custom_call.1} parent=5 // pred_region
      // Predicated region
      $region25: #{tpu_custom_call.1} parent=23 // pred_check
        %p250 = pneg %p54
      $region26: #{tpu_custom_call.1} parent=23 // pred_check_branch
        %252 = sbr.rel (%p250) target = $region28
      $region27: #{tpu_custom_call.1} parent=23 // pred_region
        %s253 = smul.u32 2, %s20
        %p254 = scmp.lt.s32.totalorder %s18, 1
        %s255 = scalar_select %p254, %s18, 1
        %p256 = scmp.lt.s32.totalorder %s253, 1
        %s257 = scalar_select %p256, %s253, 1
        %p258 = scmp.lt.s32.totalorder %s19, 0
        %s259 = scalar_select %p258, %s19, 0
        %s260 = sadd.s32 %s259, %s257
        %s261 = smul.addr %s255, 2
        %s262 = sadd.s32 %s260, %s261
        %s263 = smul.addr %s262, 8
        %s264 = scalar_lea.vmem %s0, %s263
        %s265 = smul.u32 2, %s20
      $region28: #{tpu_custom_call.1} parent=23 // pred_fallthru
        _
      // Predicated region
      $region29: #{tpu_custom_call.1} parent=23 // pred_check
        %p266 = pneg %p92
      $region30: #{tpu_custom_call.1} parent=23 // pred_check_branch
        %268 = sbr.rel (%p266) target = $region32
      $region31: #{tpu_custom_call.1} parent=23 // pred_region
        %s269 = smul.u32 %s20, 2
        %s270 = ssub.s32 %s269, 1
        %p271 = scmp.gt.s32.totalorder %s270, 0
        %s272 = scalar_select %p271, %s270, 0
        %p273 = scmp.lt.s32.totalorder %s18, 1
        %s274 = scalar_select %p273, %s18, 1
        %p275 = scmp.lt.s32.totalorder %s272, 1
        %s276 = scalar_select %p275, %s272, 1
        %p277 = scmp.lt.s32.totalorder %s19, 0
        %s278 = scalar_select %p277, %s19, 0
        %s279 = sadd.s32 %s278, %s276
        %s280 = smul.addr %s274, 2
        %s281 = sadd.s32 %s279, %s280
        %s282 = smul.addr %s281, 8
        %s283 = scalar_lea.vmem %s1, %s282
        %s284 = smul.u32 %s20, 2
        %s285 = ssub.s32 %s284, 1
        %p286 = scmp.gt.s32.totalorder %s285, 0
        %s287 = scalar_select %p286, %s285, 0
      $region32: #{tpu_custom_call.1} parent=23 // pred_fallthru
        _
      // Predicated region
      $region33: #{tpu_custom_call.1} parent=23 // pred_check
        %p288 = pneg %p130
      $region34: #{tpu_custom_call.1} parent=23 // pred_check_branch
        %290 = sbr.rel (%p288) target = $region36
      $region35: #{tpu_custom_call.1} parent=23 // pred_region
        %s291 = sadd.s32 %s20, 1
        %s292 = smul.u32 %s291, 2
        %p293 = scmp.lt.s32.totalorder %s292, 1
        %s294 = scalar_select %p293, %s292, 1
        %p295 = scmp.lt.s32.totalorder %s18, 1
        %s296 = scalar_select %p295, %s18, 1
        %p297 = scmp.lt.s32.totalorder %s294, 1
        %s298 = scalar_select %p297, %s294, 1
        %p299 = scmp.lt.s32.totalorder %s19, 0
        %s300 = scalar_select %p299, %s19, 0
        %s301 = sadd.s32 %s300, %s298
        %s302 = smul.addr %s296, 2
        %s303 = sadd.s32 %s301, %s302
        %s304 = smul.addr %s303, 8
        %s305 = scalar_lea.vmem %s2, %s304
        %s306 = sadd.s32 %s20, 1
        %s307 = smul.u32 %s306, 2
        %p308 = scmp.lt.s32.totalorder %s307, 1
        %s309 = scalar_select %p308, %s307, 1
      $region36: #{tpu_custom_call.1} parent=23 // pred_fallthru
        _
    $region24: #{tpu_custom_call.1} parent=5 // pred_fallthru
      _
    %p310 = scmp.le.s32.totalorder 1, %s11
    %p311 = scmp.lt.s32.totalorder %s11, 3
    %p312 = pnand %p310, %p311
    %p313 = pneg %p312
    // Predicated region
    $region37: #{tpu_custom_call.1} parent=5 // pred_check
      _
    $region38: #{tpu_custom_call.1} parent=5 // pred_check_branch
      %315 = sbr.rel (%p312) target = $region40
    $region39: #{tpu_custom_call.1} parent=5 // pred_region
      %s316 = ssub.s32 %s11, 1
      %s317 = smul.u32 2, %s23
      %p318 = scmp.lt.s32.totalorder %s21, 1
      %s319 = scalar_select %p318, %s21, 1
      %p320 = scmp.lt.s32.totalorder %s317, 1
      %s321 = scalar_select %p320, %s317, 1
      %p322 = scmp.lt.s32.totalorder %s22, 0
      %s323 = scalar_select %p322, %s22, 0
      %s324 = sadd.s32 %s323, %s321
      %s325 = smul.addr %s319, 2
      %s326 = sadd.s32 %s324, %s325
      %s327 = smul.addr %s326, 8
      %s328 = scalar_lea.vmem %s0, %s327
      %p329 = pneg %p60
      %p330 = pneg %p57
      %s331 = smul.u32 %s23, 2
      %s332 = ssub.s32 %s331, 1
      %p333 = scmp.gt.s32.totalorder %s332, 0
      %s334 = scalar_select %p333, %s332, 0
      %p335 = scmp.lt.s32.totalorder %s21, 1
      %s336 = scalar_select %p335, %s21, 1
      %p337 = scmp.lt.s32.totalorder %s334, 1
      %s338 = scalar_select %p337, %s334, 1
      %p339 = scmp.lt.s32.totalorder %s22, 0
      %s340 = scalar_select %p339, %s22, 0
      %s341 = sadd.s32 %s340, %s338
      %s342 = smul.addr %s336, 2
      %s343 = sadd.s32 %s341, %s342
      %s344 = smul.addr %s343, 8
      %s345 = scalar_lea.vmem %s1, %s344
      %p346 = pneg %p98
      %p347 = pneg %p95
      %s348 = sadd.s32 %s23, 1
      %s349 = smul.u32 %s348, 2
      %p350 = scmp.lt.s32.totalorder %s349, 1
      %s351 = scalar_select %p350, %s349, 1
      %p352 = scmp.lt.s32.totalorder %s21, 1
      %s353 = scalar_select %p352, %s21, 1
      %p354 = scmp.lt.s32.totalorder %s351, 1
      %s355 = scalar_select %p354, %s351, 1
      %p356 = scmp.lt.s32.totalorder %s22, 0
      %s357 = scalar_select %p356, %s22, 0
      %s358 = sadd.s32 %s357, %s355
      %s359 = smul.addr %s353, 2
      %s360 = sadd.s32 %s358, %s359
      %s361 = smul.addr %s360, 8
      %s362 = scalar_lea.vmem %s2, %s361
      %p363 = pneg %p136
      %p364 = pneg %p133
      %p365 = scmp.lt.s32.totalorder %s22, 0
      %s366 = scalar_select %p365, %s22, 0
      %s367 = smul.addr %s366, 4
      %s368 = scalar_lea.vmem %s3, %s367
      %p369 = pneg %p162
      %p370 = pneg %p159
      %p371 = scmp.lt.s32.totalorder %s22, 0
      %s372 = scalar_select %p371, %s22, 0
      %s373 = scalar_lea.vmem %s4, %s372
      %p374 = pneg %p188
      %p375 = pneg %p185
      %p376 = pneg %p218
      %p377 = pneg %p215
      %s378 = smul.u32 2, %s23
      %p379 = scmp.lt.s32.totalorder %s21, 1
      %s380 = scalar_select %p379, %s21, 1
      %p381 = scmp.lt.s32.totalorder %s378, 1
      %s382 = scalar_select %p381, %s378, 1
      %p383 = scmp.lt.s32.totalorder %s22, 0
      %s384 = scalar_select %p383, %s22, 0
      %s385 = sadd.s32 %s384, %s382
      %s386 = smul.addr %s380, 2
      %s387 = sadd.s32 %s385, %s386
      %s388 = smul.addr %s387, 8
      %s389 = scalar_lea.vmem %s5, %s388
      %s390 = smul.u32 2, %s23
      %p391 = scmp.lt.s32.totalorder %s21, 1
      %s392 = scalar_select %p391, %s21, 1
      %p393 = scmp.lt.s32.totalorder %s390, 1
      %s394 = scalar_select %p393, %s390, 1
      %p395 = scmp.lt.s32.totalorder %s22, 0
      %s396 = scalar_select %p395, %s22, 0
      %s397 = sadd.s32 %s396, %s394
      %s398 = smul.addr %s392, 2
      %s399 = sadd.s32 %s397, %s398
      %s400 = smul.addr %s399, 8
      %s401 = scalar_lea.vmem %s0, %s400
      %s402 = smul.u32 2, %s23
      %s403 = smul.u32 %s23, 2
      %s404 = ssub.s32 %s403, 1
      %p405 = scmp.gt.s32.totalorder %s404, 0
      %s406 = scalar_select %p405, %s404, 0
      %p407 = scmp.lt.s32.totalorder %s21, 1
      %s408 = scalar_select %p407, %s21, 1
      %p409 = scmp.lt.s32.totalorder %s406, 1
      %s410 = scalar_select %p409, %s406, 1
      %p411 = scmp.lt.s32.totalorder %s22, 0
      %s412 = scalar_select %p411, %s22, 0
      %s413 = sadd.s32 %s412, %s410
      %s414 = smul.addr %s408, 2
      %s415 = sadd.s32 %s413, %s414
      %s416 = smul.addr %s415, 8
      %s417 = scalar_lea.vmem %s1, %s416
      %s418 = smul.u32 %s23, 2
      %s419 = ssub.s32 %s418, 1
      %p420 = scmp.gt.s32.totalorder %s419, 0
      %s421 = scalar_select %p420, %s419, 0
      %s422 = sadd.s32 %s23, 1
      %s423 = smul.u32 %s422, 2
      %p424 = scmp.lt.s32.totalorder %s423, 1
      %s425 = scalar_select %p424, %s423, 1
      %p426 = scmp.lt.s32.totalorder %s21, 1
      %s427 = scalar_select %p426, %s21, 1
      %p428 = scmp.lt.s32.totalorder %s425, 1
      %s429 = scalar_select %p428, %s425, 1
      %p430 = scmp.lt.s32.totalorder %s22, 0
      %s431 = scalar_select %p430, %s22, 0
      %s432 = sadd.s32 %s431, %s429
      %s433 = smul.addr %s427, 2
      %s434 = sadd.s32 %s432, %s433
      %s435 = smul.addr %s434, 8
      %s436 = scalar_lea.vmem %s2, %s435
      %s437 = sadd.s32 %s23, 1
      %s438 = smul.u32 %s437, 2
      %p439 = scmp.lt.s32.totalorder %s438, 1
      %s440 = scalar_select %p439, %s438, 1
      %p441 = scmp.lt.s32.totalorder %s22, 0
      %s442 = scalar_select %p441, %s22, 0
      %s443 = smul.addr %s442, 4
      %s444 = scalar_lea.vmem %s3, %s443
      %p445 = scmp.lt.s32.totalorder %s22, 0
      %s446 = scalar_select %p445, %s22, 0
      %s447 = scalar_lea.vmem %s4, %s446
      %s448 = smul.u32 2, %s23
      %p449 = scmp.lt.s32.totalorder %s21, 1
      %s450 = scalar_select %p449, %s21, 1
      %p451 = scmp.lt.s32.totalorder %s448, 1
      %s452 = scalar_select %p451, %s448, 1
      %p453 = scmp.lt.s32.totalorder %s22, 0
      %s454 = scalar_select %p453, %s22, 0
      %s455 = sadd.s32 %s454, %s452
      %s456 = smul.addr %s450, 2
      %s457 = sadd.s32 %s455, %s456
      %s458 = smul.addr %s457, 8
      %s459 = scalar_lea.vmem %s5, %s458
      %s460 = smul.u32 2, %s23
      %s461 = smul.u32 %s23, 16
      %s462 = ssub.s32 %s461, 8
      %v463 = vld [vmem:[%s417] sm:$0xff]
      %v464 = vlaneseq
      %v465 = vshrl.u32 %v464, 7
      %v466 = vstv %s462
      %v467 = vadd.s32 %v465, %v466
      %vm468 = vcmp.ge.s32.totalorder %v467, 0
      %v469 = vsel %vm468, 1, 0
      %vm470 = vcmp.eq.s32.totalorder %v469, 1
      %v471 = vsel %vm470, %v463, 0.0
      %v472 = vld [vmem:[%s401] sm:$0xff]
      %v473 = vld [vmem:[%s401 + $0x8] sm:$0xff]
      %v474 = vld [vmem:[%s436] sm:$0xff]
      %s475 = sadd.s32 %s461, 16
      %v476 = vstv %s475
      %v477 = vadd.s32 %v465, %v476
      %vm478 = vcmp.lt.s32.totalorder %v477, 16
      %v479 = vsel %vm478, 1, 0
      %vm480 = vcmp.eq.s32.totalorder %v479, 1
      %v481 = vsel %vm480, %v474, 0.0
      %v482 = vld [vmem:[%s447] sm:$0x1]
      %v484 = vperm.slane %v482, 0
      %v486 = vld [vmem:[%s444 + $0x1] sm:$0x1]
      %v487 = vperm.slane %v486, 0
      %v488 = vmul.f32 %v472, %v487
      %v489 = vmul.f32 %v473, %v487
      %v490 = vadd.f32 %v484, %v488
      %v491 = vadd.f32 %v484, %v489
      %vm495 = vcmask 1046528
      %v496 = vrot.slane %v472, 1
      %v497 = vrot.slane %v473, 1
      %v498 = vsel %vm495, %v496, %v497
      %v499 = vrot.slane %v481, 1
      %v500 = vsel %vm495, %v497, %v499
      %v503 = vld [vmem:[%s444 + $0x2] sm:$0x1]
      %v504 = vperm.slane %v503, 0
      %v505 = vmul.f32 %v498, %v504
      %v506 = vmul.f32 %v500, %v504
      %v507 = vadd.f32 %v490, %v505
      %v508 = vadd.f32 %v491, %v506
      %vm510 = vcmask 1040384
      %v511 = vrot.slane %v471, 7
      %v512 = vrot.slane %v472, 7
      %v513 = vsel %vm510, %v511, %v512
      %v514 = vrot.slane %v473, 7
      %v515 = vsel %vm510, %v512, %v514
      %v518 = vld [vmem:[%s444] sm:$0x1]
      %v519 = vperm.slane %v518, 0
      %v520 = vmul.f32 %v513, %v519
      %v521 = vmul.f32 %v515, %v519
      %v522 = vadd.f32 %v507, %v520
      %v523 = vadd.f32 %v508, %v521
      %vm524 = vcmask 64512
      %525 = vst.msk [vmem:[%s459] sm:$0xff] %vm524, %v522
      %526 = vst.msk [vmem:[%s459 + $0x8] sm:$0xff] %vm524, %v523
      %s527 = smul.u32 2, %s23
      %p528 = scmp.lt.s32.totalorder %s21, 1
      %s529 = scalar_select %p528, %s21, 1
      %p530 = scmp.lt.s32.totalorder %s527, 1
      %s531 = scalar_select %p530, %s527, 1
      %p532 = scmp.lt.s32.totalorder %s22, 0
      %s533 = scalar_select %p532, %s22, 0
      %s534 = sadd.s32 %s533, %s531
      %s535 = smul.addr %s529, 2
      %s536 = sadd.s32 %s534, %s535
      %s537 = smul.addr %s536, 8
      %s538 = scalar_lea.vmem %s5, %s537
      // Predicated region
      $region41: #{tpu_custom_call.1} parent=39 // pred_check
        %p539 = pneg %p215
      $region42: #{tpu_custom_call.1} parent=39 // pred_check_branch
        %541 = sbr.rel (%p539) target = $region44
      $region43: #{tpu_custom_call.1} parent=39 // pred_region
        %s542 = smul.u32 2, %s23
      $region44: #{tpu_custom_call.1} parent=39 // pred_fallthru
        _
    $region40: #{tpu_custom_call.1} parent=5 // pred_fallthru
      _
    %p543 = scmp.le.s32.totalorder 2, %s11
    // Predicated region
    $region45: #{tpu_custom_call.1} parent=5 // pred_check
      %p544 = pneg %p543
    $region46: #{tpu_custom_call.1} parent=5 // pred_check_branch
      %546 = sbr.rel (%p544) target = $region48
    $region47: #{tpu_custom_call.1} parent=5 // pred_region
      %s547 = ssub.s32 %s11, 2
      // Predicated region
      $region49: #{tpu_custom_call.1} parent=47 // pred_check
        %p548 = pneg %p221
      $region50: #{tpu_custom_call.1} parent=47 // pred_check_branch
        %550 = sbr.rel (%p548) target = $region52
      $region51: #{tpu_custom_call.1} parent=47 // pred_region
        %s551 = smul.u32 2, %s26
        %p552 = scmp.lt.s32.totalorder %s24, 1
        %s553 = scalar_select %p552, %s24, 1
        %p554 = scmp.lt.s32.totalorder %s551, 1
        %s555 = scalar_select %p554, %s551, 1
        %p556 = scmp.lt.s32.totalorder %s25, 0
        %s557 = scalar_select %p556, %s25, 0
        %s558 = sadd.s32 %s557, %s555
        %s559 = smul.addr %s553, 2
        %s560 = sadd.s32 %s558, %s559
        %s561 = smul.addr %s560, 8
        %s562 = scalar_lea.vmem %s5, %s561
      $region52: #{tpu_custom_call.1} parent=47 // pred_fallthru
        _
    $region48: #{tpu_custom_call.1} parent=5 // pred_fallthru
      _
  $region6: #{tpu_custom_call.1} parent=0 // loop_footer
    %s15 = sadd.s32 1, %s11
  $region7: #{tpu_custom_call.1} parent=0 // loop_footer_branch
    %10 = sbr.rel target = $region3
  $region8: #{tpu_custom_call.1} parent=0 // loop_exit
    _

</llo_original>
